<compile_context>
chip_gen: v7x
topology: tpu7x:2x2x1
jax: 0.10.0
libtpu: 0.0.40
codegen_flags: <defaults>
</compile_context>

<pallas_src>
import jax
import jax.numpy as jnp
from jax.experimental import pallas as pl
from jax.experimental.pallas import tpu as pltpu


def _mlp_kernel(x_ref, w1_ref, b1_ref, w2_ref, b2_ref, w3_ref, b3_ref, o_ref):
    # x may be f32 or bf16; weights match x's dtype (native MXU matmul), the
    # MXU accumulates in f32 (preferred_element_type), and all elementwise
    # math (bias add / ReLU) is f32.
    x = x_ref[...]

    # Layer 1: Linear(n_features, 7) + ReLU   (block-diagonal packed form)
    h1 = jnp.dot(x, w1_ref[...], preferred_element_type=jnp.float32) + b1_ref[...]
    h1 = jnp.maximum(h1, 0.0)

    # Layer 2: Linear(7, 8) + ReLU
    h2 = jnp.dot(h1, w2_ref[...], preferred_element_type=jnp.float32) + b2_ref[...]
    h2 = jnp.maximum(h2, 0.0)

    # Layer 3: Linear(8, n_class)  (no activation)
    out = jnp.dot(h2, w3_ref[...], preferred_element_type=jnp.float32) + b3_ref[...]
    o_ref[...] = out.astype(o_ref.dtype)


def _block_diag(w, pack):
    """Replicate the tiny (in, out) weight `pack` times along the diagonal."""
    fi, fo = w.shape
    out = jnp.zeros((pack * fi, pack * fo), w.dtype)
    for k in range(pack):
        out = out.at[k * fi:(k + 1) * fi, k * fo:(k + 1) * fo].set(w)
    return out


def classifier_forward(x, params, *, batch_tile=8192, out_dtype=jnp.float32):
    """Run the 3-layer MLP.

    x: (B, n_features); streamed in its own dtype (no extra cast pass).
    batch_tile: tile size in *packed* rows (rounded to a multiple of 8 when it
                does not cover the whole packed batch).
    out_dtype: logits dtype (f32 default, matching the PyTorch module; bf16
               halves writeback bytes if the consumer tolerates it).
    """
    w1, b1, w2, b2, w3, b3 = params
    B, n_features = x.shape
    n_class = w3.shape[1]

    # ---- row packing: `pack` logical rows per lane-dense physical row.
    pack = max(1, min(8, 128 // max(n_features, 1)))
    B_pad = -(-B // pack) * pack
    if B_pad != B:
        x = jnp.pad(x, ((0, B_pad - B), (0, 0)))   # only pays a pass when needed
    Bp = B_pad // pack
    xp = x.reshape(Bp, pack * n_features)          # free row-major reshape

    # Packed (block-diagonal) weights / tiled biases; tiny, resident in VMEM.
    # Weights match x.dtype so the MXU runs natively (bf16 x -> bf16 matmul);
    # biases stay f32 (added after the f32-accumulated matmul).
    wdt = x.dtype
    w1p = _block_diag(w1, pack).astype(wdt)
    w2p = _block_diag(w2, pack).astype(wdt)
    w3p = _block_diag(w3, pack).astype(wdt)
    b1p = jnp.tile(b1, (1, pack)).astype(jnp.float32)
    b2p = jnp.tile(b2, (1, pack)).astype(jnp.float32)
    b3p = jnp.tile(b3, (1, pack)).astype(jnp.float32)

    # ---- batch tiling over packed rows.
    tbp = min(int(batch_tile), Bp)
    # Guarantee >=2 grid steps when the batch is big enough, so the "parallel"
    # axis can shard across v7x's two TensorCores (no-op on v5e/v6e).
    if Bp > 8 and tbp >= Bp:
        tbp = pl.cdiv(Bp, 2)
    if tbp < Bp:
        tbp = max(8, (tbp // 8) * 8)               # (8, 128) sublane rule
    grid = (pl.cdiv(Bp, tbp),)

    # Weights / biases: one block covering the whole (tiny) array, same block
    # for every batch tile -> loaded once, kept resident, no re-DMA.
    def rep(a):
        return pl.BlockSpec(a.shape, lambda i: (0, 0))

    # VMEM budget derived from the actual tile footprint (x up to 3 buffers,
    # output double-buffered, params double-buffered), with headroom.
    x_tile_bytes = tbp * pack * n_features * jnp.dtype(x.dtype).itemsize
    out_tile_bytes = tbp * pack * n_class * jnp.dtype(out_dtype).itemsize
    param_bytes = sum(int(a.size) * a.dtype.itemsize
                      for a in (w1p, b1p, w2p, b2p, w3p, b3p))
    need = 3 * x_tile_bytes + 2 * out_tile_bytes + 2 * param_bytes
    vmem_limit = int(min(max(int(need * 1.3) + (2 << 20), 32 * 1024 * 1024),
                         128 * 1024 * 1024))

    # Advisory cost estimate for XLA's scheduler.
    flops = 2 * B_pad * (n_features * 7 + 7 * 8 + 8 * n_class)
    bytes_accessed = (B_pad * n_features * jnp.dtype(x.dtype).itemsize
                      + B_pad * n_class * jnp.dtype(out_dtype).itemsize
                      + param_bytes)
    cost = pl.CostEstimate(flops=int(flops), transcendentals=0,
                           bytes_accessed=int(bytes_accessed))

    def _invoke(use_buffered):
        if use_buffered:
            x_spec = pl.BlockSpec((tbp, pack * n_features), lambda i: (i, 0),
                                  pipeline_mode=pl.Buffered(3))
        else:
            x_spec = pl.BlockSpec((tbp, pack * n_features), lambda i: (i, 0))
        return pl.pallas_call(
            _mlp_kernel,
            out_shape=jax.ShapeDtypeStruct((Bp, pack * n_class), out_dtype),
            grid_spec=pltpu.PrefetchScalarGridSpec(
                num_scalar_prefetch=0,
                grid=grid,
                in_specs=[
                    x_spec,
                    rep(w1p), rep(b1p),
                    rep(w2p), rep(b2p),
                    rep(w3p), rep(b3p),
                ],
                out_specs=pl.BlockSpec((tbp, pack * n_class), lambda i: (i, 0)),
            ),
            compiler_params=pltpu.CompilerParams(
                dimension_semantics=("parallel",),
                vmem_limit_bytes=vmem_limit,
            ),
            cost_estimate=cost,
        )(xp, w1p, b1p, w2p, b2p, w3p, b3p)

    # Try the 3-deep buffered x pipeline on deep grids; fall back cleanly if
    # this JAX/Mosaic build rejects pipeline_mode.
    attempts = (True, False) if grid[0] >= 3 else (False,)
    out_packed, last_err = None, None
    for use_buffered in attempts:
        try:
            out_packed = _invoke(use_buffered)
            jax.block_until_ready(out_packed)
            break
        except Exception as e:           # fallback path
            last_err = e
            out_packed = None
    if out_packed is None:
        raise last_err

    # Unpack rows and drop padding (free row-major reshape + slice).
    return out_packed.reshape(B_pad, n_class)[:B]


def init_params(key, n_features, n_class):
    """Deterministic init mimicking PyTorch Linear default (uniform +-1/sqrt(fan_in)).

    Weights stored transposed, i.e. (in_dim, out_dim); biases as (1, out_dim).
    """
    dims = [(n_features, 7), (7, 8), (8, n_class)]
    params = []
    for (fan_in, fan_out) in dims:
        key, kw, kb = jax.random.split(key, 3)
        bound = 1.0 / jnp.sqrt(jnp.float32(fan_in))
        w = jax.random.uniform(kw, (fan_in, fan_out), jnp.float32, -bound, bound)
        b = jax.random.uniform(kb, (1, fan_out), jnp.float32, -bound, bound)
        params += [w, b]
    return tuple(params)


def _reference_forward(x, params):
    w1, b1, w2, b2, w3, b3 = params
    h1 = jnp.maximum(x @ w1 + b1, 0.0)
    h2 = jnp.maximum(h1 @ w2 + b2, 0.0)
    return h2 @ w3 + b3


if __name__ == "__main__":
    n_features = 32
    n_class = 4

    key = jax.random.PRNGKey(0)
    key, kx = jax.random.split(key)
    params = init_params(key, n_features, n_class)

    # Test 1: small batch, f32 streaming, single tile.
    x = jax.random.normal(kx, (8, n_features), jnp.float32)
    out = jax.block_until_ready(classifier_forward(x, params))
    ref = _reference_forward(x, params)
    assert out.shape == (8, n_class), out.shape
    assert jnp.allclose(out, ref, atol=1e-4, rtol=1e-4), "f32 small-batch mismatch"

    # Test 2: deep grid (8 steps) -> exercises pipelining + Buffered(3) path.
    key, kx2 = jax.random.split(key)
    x2 = jax.random.normal(kx2, (256, n_features), jnp.float32)
    out2 = jax.block_until_ready(classifier_forward(x2, params, batch_tile=8))
    ref2 = _reference_forward(x2, params)
    assert out2.shape == (256, n_class), out2.shape
    assert jnp.allclose(out2, ref2, atol=1e-4, rtol=1e-4), "tiled f32 mismatch"

    # Test 3: batch not a multiple of the packing factor (exercises padding).
    key, kx3 = jax.random.split(key)
    x3 = jax.random.normal(kx3, (10, n_features), jnp.float32)
    out3 = jax.block_until_ready(classifier_forward(x3, params))
    ref3 = _reference_forward(x3, params)
    assert out3.shape == (10, n_class), out3.shape
    assert jnp.allclose(out3, ref3, atol=1e-4, rtol=1e-4), "padded-batch mismatch"

    # Test 4: default tiling with a batch large enough to trigger the
    # ">= 2 grid steps" split (two-TensorCore sharding on v7x).
    key, kx4 = jax.random.split(key)
    x4 = jax.random.normal(kx4, (1024, n_features), jnp.float32)
    out4 = jax.block_until_ready(classifier_forward(x4, params))
    ref4 = _reference_forward(x4, params)
    assert out4.shape == (1024, n_class), out4.shape
    assert jnp.allclose(out4, ref4, atol=1e-4, rtol=1e-4), "split-grid mismatch"

    # Test 5: caller already holds bf16 activations -> native bf16 MXU path.
    key, kx5 = jax.random.split(key)
    x5 = jax.random.normal(kx5, (64, n_features), jnp.float32).astype(jnp.bfloat16)
    out5 = jax.block_until_ready(classifier_forward(x5, params))
    ref5 = _reference_forward(x5.astype(jnp.float32), params)
    assert out5.shape == (64, n_class), out5.shape
    assert jnp.allclose(out5, ref5, atol=5e-2, rtol=5e-2), "bf16-input mismatch"

    print("KERNEL_OK")
</pallas_src>

<mosaic_0001>
module attributes {stable_mosaic.version = 11 : i64} {
  func.func @_mlp_kernel(%arg0: i32, %arg1: memref<2x128xf32, #tpu.memory_space<vmem>>, %arg2: memref<128x28xf32, #tpu.memory_space<vmem>>, %arg3: memref<1x28xf32, #tpu.memory_space<vmem>>, %arg4: memref<28x32xf32, #tpu.memory_space<vmem>>, %arg5: memref<1x32xf32, #tpu.memory_space<vmem>>, %arg6: memref<32x16xf32, #tpu.memory_space<vmem>>, %arg7: memref<1x16xf32, #tpu.memory_space<vmem>>, %arg8: memref<2x16xf32, #tpu.memory_space<vmem>>) attributes {dimension_semantics = [#tpu.dimension_semantics<parallel>], iteration_bounds = array<i64: 1>, scalar_prefetch = 0 : i64, scratch_operands = 0 : i64, tpu.core_type = #tpu.core_type<tc>, window_params = [{transform_indices = @transform_0, window_bounds = array<i64: 2, 128>}, {pipeline_mode = #tpu.pipeline_mode<synchronous>, transform_indices = @transform_1, window_bounds = array<i64: 128, 28>}, {pipeline_mode = #tpu.pipeline_mode<synchronous>, transform_indices = @transform_2, window_bounds = array<i64: 1, 28>}, {pipeline_mode = #tpu.pipeline_mode<synchronous>, transform_indices = @transform_3, window_bounds = array<i64: 28, 32>}, {pipeline_mode = #tpu.pipeline_mode<synchronous>, transform_indices = @transform_4, window_bounds = array<i64: 1, 32>}, {pipeline_mode = #tpu.pipeline_mode<synchronous>, transform_indices = @transform_5, window_bounds = array<i64: 32, 16>}, {pipeline_mode = #tpu.pipeline_mode<synchronous>, transform_indices = @transform_6, window_bounds = array<i64: 1, 16>}, {transform_indices = @transform_7, window_bounds = array<i64: 2, 16>}]} {
    %c0 = arith.constant 0 : index
    %c0_0 = arith.constant 0 : index
    %0 = vector.load %arg1[%c0, %c0_0] : memref<2x128xf32, #tpu.memory_space<vmem>>, vector<2x128xf32>
    %c0_1 = arith.constant 0 : index
    %c0_2 = arith.constant 0 : index
    %1 = vector.load %arg2[%c0_1, %c0_2] : memref<128x28xf32, #tpu.memory_space<vmem>>, vector<128x28xf32>
    %cst = arith.constant dense<0.000000e+00> : vector<2x28xf32>
    %2 = tpu.matmul %0, %1, %cst {dimension_numbers = #tpu.dot_dimension_numbers<[1], [0], [0], [1], [0, 0, 1, 1], [], []>} : vector<2x128xf32>, vector<128x28xf32>, vector<2x28xf32> -> vector<2x28xf32>
    %c0_3 = arith.constant 0 : index
    %c0_4 = arith.constant 0 : index
    %3 = vector.load %arg3[%c0_3, %c0_4] : memref<1x28xf32, #tpu.memory_space<vmem>>, vector<1x28xf32>
    %4 = vector.broadcast %3 : vector<1x28xf32> to vector<2x28xf32>
    %5 = arith.addf %2, %4 : vector<2x28xf32>
    %cst_5 = arith.constant 0.000000e+00 : f32
    %6 = vector.broadcast %cst_5 : f32 to vector<2x28xf32>
    %7 = arith.maximumf %5, %6 : vector<2x28xf32>
    %c0_6 = arith.constant 0 : index
    %c0_7 = arith.constant 0 : index
    %8 = vector.load %arg4[%c0_6, %c0_7] : memref<28x32xf32, #tpu.memory_space<vmem>>, vector<28x32xf32>
    %cst_8 = arith.constant dense<0.000000e+00> : vector<2x32xf32>
    %9 = tpu.matmul %7, %8, %cst_8 {dimension_numbers = #tpu.dot_dimension_numbers<[1], [0], [0], [1], [0, 0, 1, 1], [], []>} : vector<2x28xf32>, vector<28x32xf32>, vector<2x32xf32> -> vector<2x32xf32>
    %c0_9 = arith.constant 0 : index
    %c0_10 = arith.constant 0 : index
    %10 = vector.load %arg5[%c0_9, %c0_10] : memref<1x32xf32, #tpu.memory_space<vmem>>, vector<1x32xf32>
    %11 = vector.broadcast %10 : vector<1x32xf32> to vector<2x32xf32>
    %12 = arith.addf %9, %11 : vector<2x32xf32>
    %cst_11 = arith.constant 0.000000e+00 : f32
    %13 = vector.broadcast %cst_11 : f32 to vector<2x32xf32>
    %14 = arith.maximumf %12, %13 : vector<2x32xf32>
    %c0_12 = arith.constant 0 : index
    %c0_13 = arith.constant 0 : index
    %15 = vector.load %arg6[%c0_12, %c0_13] : memref<32x16xf32, #tpu.memory_space<vmem>>, vector<32x16xf32>
    %cst_14 = arith.constant dense<0.000000e+00> : vector<2x16xf32>
    %16 = tpu.matmul %14, %15, %cst_14 {dimension_numbers = #tpu.dot_dimension_numbers<[1], [0], [0], [1], [0, 0, 1, 1], [], []>} : vector<2x32xf32>, vector<32x16xf32>, vector<2x16xf32> -> vector<2x16xf32>
    %c0_15 = arith.constant 0 : index
    %c0_16 = arith.constant 0 : index
    %17 = vector.load %arg7[%c0_15, %c0_16] : memref<1x16xf32, #tpu.memory_space<vmem>>, vector<1x16xf32>
    %18 = vector.broadcast %17 : vector<1x16xf32> to vector<2x16xf32>
    %19 = arith.addf %16, %18 : vector<2x16xf32>
    %c0_17 = arith.constant 0 : index
    %c0_18 = arith.constant 0 : index
    %20 = vector.load %arg8[%c0_17, %c0_18] : memref<2x16xf32, #tpu.memory_space<vmem>>, vector<2x16xf32>
    tpu.vector_store %arg8[%c0_17, %c0_18], %19 {strides = array<i32>} : memref<2x16xf32, #tpu.memory_space<vmem>>, vector<2x16xf32>,
    return
  }
  func.func @transform_0(%arg0: i32) -> (i32, i32) {
    %c0_i32 = arith.constant 0 : i32
    %c0_i32_0 = arith.constant 0 : i32
    return %arg0, %c0_i32 : i32, i32
  }
  func.func @transform_1(%arg0: i32) -> (i32, i32) {
    %c0_i32 = arith.constant 0 : i32
    %c0_i32_0 = arith.constant 0 : i32
    %c0_i32_1 = arith.constant 0 : i32
    return %c0_i32, %c0_i32_0 : i32, i32
  }
  func.func @transform_2(%arg0: i32) -> (i32, i32) {
    %c0_i32 = arith.constant 0 : i32
    %c0_i32_0 = arith.constant 0 : i32
    %c0_i32_1 = arith.constant 0 : i32
    return %c0_i32, %c0_i32_0 : i32, i32
  }
  func.func @transform_3(%arg0: i32) -> (i32, i32) {
    %c0_i32 = arith.constant 0 : i32
    %c0_i32_0 = arith.constant 0 : i32
    %c0_i32_1 = arith.constant 0 : i32
    return %c0_i32, %c0_i32_0 : i32, i32
  }
  func.func @transform_4(%arg0: i32) -> (i32, i32) {
    %c0_i32 = arith.constant 0 : i32
    %c0_i32_0 = arith.constant 0 : i32
    %c0_i32_1 = arith.constant 0 : i32
    return %c0_i32, %c0_i32_0 : i32, i32
  }
  func.func @transform_5(%arg0: i32) -> (i32, i32) {
    %c0_i32 = arith.constant 0 : i32
    %c0_i32_0 = arith.constant 0 : i32
    %c0_i32_1 = arith.constant 0 : i32
    return %c0_i32, %c0_i32_0 : i32, i32
  }
  func.func @transform_6(%arg0: i32) -> (i32, i32) {
    %c0_i32 = arith.constant 0 : i32
    %c0_i32_0 = arith.constant 0 : i32
    %c0_i32_1 = arith.constant 0 : i32
    return %c0_i32, %c0_i32_0 : i32, i32
  }
  func.func @transform_7(%arg0: i32) -> (i32, i32) {
    %c0_i32 = arith.constant 0 : i32
    %c0_i32_0 = arith.constant 0 : i32
    return %arg0, %c0_i32 : i32, i32
  }
}

</mosaic_0001>

<llo_original>
// kernel: tpu_custom_call.1
$region0: #{tpu_custom_call.1}
  #allocation0 [shape = 'u32[]', space=smem, size = 0x4, offset = 0x4, fixed_abs, tag = 'smem constant byte address 0x4 - core index']
  #allocation1 [shape = 'u32[144,128]{1,0:T(1,128)}', space=vmem, size = 0x12000, scoped, tag = 'internal scratch']
  %s0 = inlined_call_operand.vmem [shape: f32[2,128], index: 0, kind: input, shape index: {}]
  %s1 = inlined_call_operand.vmem [shape: f32[128,28], index: 1, kind: input, shape index: {}]
  %s2 = inlined_call_operand.vmem [shape: f32[1,28], index: 2, kind: input, shape index: {}]
  %s3 = inlined_call_operand.vmem [shape: f32[28,32], index: 3, kind: input, shape index: {}]
  %s4 = inlined_call_operand.vmem [shape: f32[1,32], index: 4, kind: input, shape index: {}]
  %s5 = inlined_call_operand.vmem [shape: f32[32,16], index: 5, kind: input, shape index: {}]
  %s6 = inlined_call_operand.vmem [shape: f32[1,16], index: 6, kind: input, shape index: {}]
  %s7 = inlined_call_operand.hbm [shape: f32[2,16], index: 7, kind: output, shape index: {}]
  %s8 = sld [smem:[#allocation0]]
  $region38: #{tpu_custom_call.1} parent=0
    _
  %s10 = ssub.s32 1, %s8
  %s11 = scalar_select 0, %s10, %s8
  $region1: #{tpu_custom_call.1} parent=0
    #allocation2 [shape = 'u8[1024]{0}', space=vmem, size = 0x400, scoped, tag = 'output window, operand 0, single buffered']
    #allocation3 [shape = 's32[1]{0}', space=sflag, size = 0x4, scoped, tag = 'scoped memory for tpu_custom_call.1']
    %12 = vsyncpa [#allocation3], 0
    // Predicated region
    $region2: #{tpu_custom_call.1} parent=1 // pred_check
      _
    $region3: #{tpu_custom_call.1} parent=1 // pred_check_branch
      %14 = sbr.rel (0) target = $region5
    $region4: #{tpu_custom_call.1} parent=1 // pred_region
      _
    $region5: #{tpu_custom_call.1} parent=1 // pred_fallthru
      _
    // Predicated region
    $region6: #{tpu_custom_call.1} parent=1 // pred_check
      _
    $region7: #{tpu_custom_call.1} parent=1 // pred_check_branch
      %16 = sbr.rel (0) target = $region9
    $region8: #{tpu_custom_call.1} parent=1 // pred_region
      _
    $region9: #{tpu_custom_call.1} parent=1 // pred_fallthru
      _
    // Predicated region
    $region10: #{tpu_custom_call.1} parent=1 // pred_check
      _
    $region11: #{tpu_custom_call.1} parent=1 // pred_check_branch
      %18 = sbr.rel (0) target = $region13
    $region12: #{tpu_custom_call.1} parent=1 // pred_region
      _
    $region13: #{tpu_custom_call.1} parent=1 // pred_fallthru
      _
    // Predicated region
    $region14: #{tpu_custom_call.1} parent=1 // pred_check
      _
    $region15: #{tpu_custom_call.1} parent=1 // pred_check_branch
      %20 = sbr.rel (0) target = $region17
    $region16: #{tpu_custom_call.1} parent=1 // pred_region
      _
    $region17: #{tpu_custom_call.1} parent=1 // pred_fallthru
      _
    // Predicated region
    $region18: #{tpu_custom_call.1} parent=1 // pred_check
      _
    $region19: #{tpu_custom_call.1} parent=1 // pred_check_branch
      %22 = sbr.rel (0) target = $region21
    $region20: #{tpu_custom_call.1} parent=1 // pred_region
      _
    $region21: #{tpu_custom_call.1} parent=1 // pred_fallthru
      _
    // Predicated region
    $region22: #{tpu_custom_call.1} parent=1 // pred_check
      _
    $region23: #{tpu_custom_call.1} parent=1 // pred_check_branch
      %24 = sbr.rel (0) target = $region25
    $region24: #{tpu_custom_call.1} parent=1 // pred_region
      _
    $region25: #{tpu_custom_call.1} parent=1 // pred_fallthru
      _
    // Predicated region
    $region26: #{tpu_custom_call.1} parent=1 // pred_check
      _
    $region27: #{tpu_custom_call.1} parent=1 // pred_check_branch
      %26 = sbr.rel (0) target = $region29
    $region28: #{tpu_custom_call.1} parent=1 // pred_region
      _
    $region29: #{tpu_custom_call.1} parent=1 // pred_fallthru
      _
    %v27 = vld [vmem:[%s0] sm:$0x3]
    %v28 = vld [vmem:[%s1] sm:$0xff]
    %v29 = vld [vmem:[%s1 + $0x8] sm:$0xff]
    %v30 = vld [vmem:[%s1 + $0x10] sm:$0xff]
    %v31 = vld [vmem:[%s1 + $0x18] sm:$0xff]
    %v32 = vld [vmem:[%s1 + $0x20] sm:$0xff]
    %v33 = vld [vmem:[%s1 + $0x28] sm:$0xff]
    %v34 = vld [vmem:[%s1 + $0x30] sm:$0xff]
    %v35 = vld [vmem:[%s1 + $0x38] sm:$0xff]
    %v36 = vld [vmem:[%s1 + $0x40] sm:$0xff]
    %v37 = vld [vmem:[%s1 + $0x48] sm:$0xff]
    %v38 = vld [vmem:[%s1 + $0x50] sm:$0xff]
    %v39 = vld [vmem:[%s1 + $0x58] sm:$0xff]
    %v40 = vld [vmem:[%s1 + $0x60] sm:$0xff]
    %v41 = vld [vmem:[%s1 + $0x68] sm:$0xff]
    %v42 = vld [vmem:[%s1 + $0x70] sm:$0xff]
    %v43 = vld [vmem:[%s1 + $0x78] sm:$0xff]
    %v44 = vld [vmem:[%s2] sm:$0x1]
    %v46 = vlaneseq
    %v47 = vshrl.u32 %v46, 7
    %v48 = vsub.s32 0, %v47
    %v49 = vrot.slane %v44, %v48
    %51 = vmatprep.subr.mxu0 0.0
    %52 = vmatpush1.msra.mxu0 %v28
    %53 = vmatprep.subr.mxu0 0.0
    %54 = vmatpush1.msra.mxu0 %v29
    %55 = vmatprep.subr.mxu0 0.0
    %56 = vmatpush1.msra.mxu0 %v30
    %57 = vmatprep.subr.mxu0 0.0
    %58 = vmatpush1.msra.mxu0 %v31
    %59 = vmatprep.subr.mxu0 0.0
    %60 = vmatpush1.msra.mxu0 %v32
    %61 = vmatprep.subr.mxu0 0.0
    %62 = vmatpush1.msra.mxu0 %v33
    %63 = vmatprep.subr.mxu0 0.0
    %64 = vmatpush1.msra.mxu0 %v34
    %65 = vmatprep.subr.mxu0 0.0
    %66 = vmatpush1.msra.mxu0 %v35
    %67 = vmatprep.subr.mxu0 0.0
    %68 = vmatpush1.msra.mxu0 %v36
    %69 = vmatprep.subr.mxu0 0.0
    %70 = vmatpush1.msra.mxu0 %v37
    %71 = vmatprep.subr.mxu0 0.0
    %72 = vmatpush1.msra.mxu0 %v38
    %73 = vmatprep.subr.mxu0 0.0
    %74 = vmatpush1.msra.mxu0 %v39
    %75 = vmatprep.subr.mxu0 0.0
    %76 = vmatpush1.msra.mxu0 %v40
    %77 = vmatprep.subr.mxu0 0.0
    %78 = vmatpush1.msra.mxu0 %v41
    %79 = vmatprep.subr.mxu0 0.0
    %80 = vmatpush1.msra.mxu0 %v42
    %81 = vmatprep.subr.mxu0 0.0
    %82 = vmatpush1.msra.mxu0 %v43
    %83 = vmatprep.subr.mxu0 0.0
    %84 = vmatpush1.msra.mxu0 0.0
    %85 = vmatprep.subr.mxu0 0.0
    %86 = vmatpush1.msra.mxu0 0.0
    %87 = vmatprep.subr.mxu0 0.0
    %88 = vmatpush1.msra.mxu0 0.0
    %89 = vmatprep.subr.mxu0 0.0
    %90 = vmatpush1.msra.mxu0 0.0
    %91 = vmatprep.subr.mxu0 0.0
    %92 = vmatpush1.msra.mxu0 0.0
    %93 = vmatprep.subr.mxu0 0.0
    %94 = vmatpush1.msra.mxu0 0.0
    %95 = vmatprep.subr.mxu0 0.0
    %96 = vmatpush1.msra.mxu0 0.0
    %97 = vmatprep.subr.mxu0 0.0
    %98 = vmatpush1.msra.mxu0 0.0
    %99 = vmatprep.subr.mxu0 0.0
    %100 = vmatpush1.msra.mxu0 0.0
    %101 = vmatprep.subr.mxu0 0.0
    %102 = vmatpush1.msra.mxu0 0.0
    %103 = vmatprep.subr.mxu0 0.0
    %104 = vmatpush1.msra.mxu0 0.0
    %105 = vmatprep.subr.mxu0 0.0
    %106 = vmatpush1.msra.mxu0 0.0
    %107 = vmatprep.subr.mxu0 0.0
    %108 = vmatpush1.msra.mxu0 0.0
    %109 = vmatprep.subr.mxu0 0.0
    %110 = vmatpush1.msra.mxu0 0.0
    %111 = vmatprep.subr.mxu0 0.0
    %112 = vmatpush1.msra.mxu0 0.0
    %113 = vmatprep.subr.mxu0 0.0
    %114 = vmatpush1.msra.mxu0 0.0
    %115 = vmatprep.mubr.f32.mxu0 0.0
    %116 = vmatmul.mubr.f32.gmra.mrb[0].mxu0 %v27
    %v117 = vpop.f32.mrb[0].mxu0
    %v118 = vadd.f32 %v49, %v117
    %v119 = vpop.f32.mrb[0].mxu0
    %120 = vdwg.mxu0
    %v121 = vmax.f32 %v118, 0.0
    %v122 = vld [vmem:[%s3] sm:$0xff]
    %v123 = vld [vmem:[%s3 + $0x8] sm:$0xff]
    %v124 = vld [vmem:[%s3 + $0x10] sm:$0xff]
    %v125 = vld [vmem:[%s3 + $0x18] sm:$0xf]
    %v126 = vld [vmem:[%s4] sm:$0x1]
    %v128 = vlaneseq
    %v129 = vshrl.u32 %v128, 7
    %v130 = vsub.s32 0, %v129
    %v131 = vrot.slane %v126, %v130
    %vm133 = vcmask 228352
    %v135 = vsel %vm133, %v121, 0
    %vm137 = vcmask 1043456
    %v139 = vsel %vm137, %v125, 0
    %141 = vmatprep.subr.mxu0 0.0
    %142 = vmatpush1.msra.mxu0 %v122
    %143 = vmatprep.subr.mxu0 0.0
    %144 = vmatpush1.msra.mxu0 %v123
    %145 = vmatprep.subr.mxu0 0.0
    %146 = vmatpush1.msra.mxu0 %v124
    %147 = vmatprep.subr.mxu0 0.0
    %148 = vmatpush1.msra.mxu0 %v139
    %149 = vmatprep.subr.mxu0 0.0
    %150 = vmatpush1.msra.mxu0 0.0
    %151 = vmatprep.subr.mxu0 0.0
    %152 = vmatpush1.msra.mxu0 0.0
    %153 = vmatprep.subr.mxu0 0.0
    %154 = vmatpush1.msra.mxu0 0.0
    %155 = vmatprep.subr.mxu0 0.0
    %156 = vmatpush1.msra.mxu0 0.0
    %157 = vmatprep.subr.mxu0 0.0
    %158 = vmatpush1.msra.mxu0 0.0
    %159 = vmatprep.subr.mxu0 0.0
    %160 = vmatpush1.msra.mxu0 0.0
    %161 = vmatprep.subr.mxu0 0.0
    %162 = vmatpush1.msra.mxu0 0.0
    %163 = vmatprep.subr.mxu0 0.0
    %164 = vmatpush1.msra.mxu0 0.0
    %165 = vmatprep.subr.mxu0 0.0
    %166 = vmatpush1.msra.mxu0 0.0
    %167 = vmatprep.subr.mxu0 0.0
    %168 = vmatpush1.msra.mxu0 0.0
    %169 = vmatprep.subr.mxu0 0.0
    %170 = vmatpush1.msra.mxu0 0.0
    %171 = vmatprep.subr.mxu0 0.0
    %172 = vmatpush1.msra.mxu0 0.0
    %173 = vmatprep.subr.mxu0 0.0
    %174 = vmatpush1.msra.mxu0 0.0
    %175 = vmatprep.subr.mxu0 0.0
    %176 = vmatpush1.msra.mxu0 0.0
    %177 = vmatprep.subr.mxu0 0.0
    %178 = vmatpush1.msra.mxu0 0.0
    %179 = vmatprep.subr.mxu0 0.0
    %180 = vmatpush1.msra.mxu0 0.0
    %181 = vmatprep.subr.mxu0 0.0
    %182 = vmatpush1.msra.mxu0 0.0
    %183 = vmatprep.subr.mxu0 0.0
    %184 = vmatpush1.msra.mxu0 0.0
    %185 = vmatprep.subr.mxu0 0.0
    %186 = vmatpush1.msra.mxu0 0.0
    %187 = vmatprep.subr.mxu0 0.0
    %188 = vmatpush1.msra.mxu0 0.0
    %189 = vmatprep.subr.mxu0 0.0
    %190 = vmatpush1.msra.mxu0 0.0
    %191 = vmatprep.subr.mxu0 0.0
    %192 = vmatpush1.msra.mxu0 0.0
    %193 = vmatprep.subr.mxu0 0.0
    %194 = vmatpush1.msra.mxu0 0.0
    %195 = vmatprep.subr.mxu0 0.0
    %196 = vmatpush1.msra.mxu0 0.0
    %197 = vmatprep.subr.mxu0 0.0
    %198 = vmatpush1.msra.mxu0 0.0
    %199 = vmatprep.subr.mxu0 0.0
    %200 = vmatpush1.msra.mxu0 0.0
    %201 = vmatprep.subr.mxu0 0.0
    %202 = vmatpush1.msra.mxu0 0.0
    %203 = vmatprep.subr.mxu0 0.0
    %204 = vmatpush1.msra.mxu0 0.0
    %205 = vmatprep.mubr.f32.mxu0 0.0
    %206 = vmatmul.mubr.f32.gmra.mrb[0].mxu0 %v135
    %v207 = vpop.f32.mrb[0].mxu0
    %v208 = vadd.f32 %v131, %v207
    %v209 = vpop.f32.mrb[0].mxu0
    %210 = vdwg.mxu0
    %v211 = vmax.f32 %v208, 0.0
    %v212 = vld [vmem:[%s5] sm:$0xff]
    %v213 = vld [vmem:[%s5 + $0x8] sm:$0xff]
    %v214 = vld [vmem:[%s5 + $0x10] sm:$0xff]
    %v215 = vld [vmem:[%s5 + $0x18] sm:$0xff]
    %v216 = vld [vmem:[%s6] sm:$0x1]
    %v218 = vlaneseq
    %v219 = vshrl.u32 %v218, 7
    %v220 = vsub.s32 0, %v219
    %v221 = vrot.slane %v216, %v220
    %vm223 = vcmask 261120
    %v225 = vsel %vm223, %v211, 0
    %227 = vmatprep.subr.mxu0 0.0
    %228 = vmatpush1.msra.mxu0 %v212
    %229 = vmatprep.subr.mxu0 0.0
    %230 = vmatpush1.msra.mxu0 %v213
    %231 = vmatprep.subr.mxu0 0.0
    %232 = vmatpush1.msra.mxu0 %v214
    %233 = vmatprep.subr.mxu0 0.0
    %234 = vmatpush1.msra.mxu0 %v215
    %235 = vmatprep.subr.mxu0 0.0
    %236 = vmatpush1.msra.mxu0 0.0
    %237 = vmatprep.subr.mxu0 0.0
    %238 = vmatpush1.msra.mxu0 0.0
    %239 = vmatprep.subr.mxu0 0.0
    %240 = vmatpush1.msra.mxu0 0.0
    %241 = vmatprep.subr.mxu0 0.0
    %242 = vmatpush1.msra.mxu0 0.0
    %243 = vmatprep.subr.mxu0 0.0
    %244 = vmatpush1.msra.mxu0 0.0
    %245 = vmatprep.subr.mxu0 0.0
    %246 = vmatpush1.msra.mxu0 0.0
    %247 = vmatprep.subr.mxu0 0.0
    %248 = vmatpush1.msra.mxu0 0.0
    %249 = vmatprep.subr.mxu0 0.0
    %250 = vmatpush1.msra.mxu0 0.0
    %251 = vmatprep.subr.mxu0 0.0
    %252 = vmatpush1.msra.mxu0 0.0
    %253 = vmatprep.subr.mxu0 0.0
    %254 = vmatpush1.msra.mxu0 0.0
    %255 = vmatprep.subr.mxu0 0.0
    %256 = vmatpush1.msra.mxu0 0.0
    %257 = vmatprep.subr.mxu0 0.0
    %258 = vmatpush1.msra.mxu0 0.0
    %259 = vmatprep.subr.mxu0 0.0
    %260 = vmatpush1.msra.mxu0 0.0
    %261 = vmatprep.subr.mxu0 0.0
    %262 = vmatpush1.msra.mxu0 0.0
    %263 = vmatprep.subr.mxu0 0.0
    %264 = vmatpush1.msra.mxu0 0.0
    %265 = vmatprep.subr.mxu0 0.0
    %266 = vmatpush1.msra.mxu0 0.0
    %267 = vmatprep.subr.mxu0 0.0
    %268 = vmatpush1.msra.mxu0 0.0
    %269 = vmatprep.subr.mxu0 0.0
    %270 = vmatpush1.msra.mxu0 0.0
    %271 = vmatprep.subr.mxu0 0.0
    %272 = vmatpush1.msra.mxu0 0.0
    %273 = vmatprep.subr.mxu0 0.0
    %274 = vmatpush1.msra.mxu0 0.0
    %275 = vmatprep.subr.mxu0 0.0
    %276 = vmatpush1.msra.mxu0 0.0
    %277 = vmatprep.subr.mxu0 0.0
    %278 = vmatpush1.msra.mxu0 0.0
    %279 = vmatprep.subr.mxu0 0.0
    %280 = vmatpush1.msra.mxu0 0.0
    %281 = vmatprep.subr.mxu0 0.0
    %282 = vmatpush1.msra.mxu0 0.0
    %283 = vmatprep.subr.mxu0 0.0
    %284 = vmatpush1.msra.mxu0 0.0
    %285 = vmatprep.subr.mxu0 0.0
    %286 = vmatpush1.msra.mxu0 0.0
    %287 = vmatprep.subr.mxu0 0.0
    %288 = vmatpush1.msra.mxu0 0.0
    %289 = vmatprep.subr.mxu0 0.0
    %290 = vmatpush1.msra.mxu0 0.0
    %291 = vmatprep.mubr.f32.mxu0 0.0
    %292 = vmatmul.mubr.f32.gmra.mrb[0].mxu0 %v225
    %v293 = vpop.f32.mrb[0].mxu0
    %v294 = vadd.f32 %v221, %v293
    %v295 = vpop.f32.mrb[0].mxu0
    %296 = vdwg.mxu0
    %vm297 = vcmask 123904
    %298 = vst.msk [vmem:[#allocation2] sm:$0x3] %vm297, %v294
    // Predicated region
    $region30: #{tpu_custom_call.1} parent=1 // pred_check
      _
    $region31: #{tpu_custom_call.1} parent=1 // pred_check_branch
      %300 = sbr.rel (0) target = $region33
    $region32: #{tpu_custom_call.1} parent=1 // pred_region
      %s302 = ssub.s32 32, 32
      %303 = vsyncadd [#allocation3], %s302
      %s305 = sshll.u32 [#allocation2], 4
      %s306 = int_to_ptr.vmem [resolvable:$true] %s305
      %308 = dma.vmem_to_hbm [thread:$0]  %s306, 32, %s7, [#allocation3]
    $region33: #{tpu_custom_call.1} parent=1 // pred_fallthru
      _
    // Predicated region
    $region34: #{tpu_custom_call.1} parent=1 // pred_check
      _
    $region35: #{tpu_custom_call.1} parent=1 // pred_check_branch
      %310 = sbr.rel (0) target = $region37
    $region36: #{tpu_custom_call.1} parent=1 // pred_region
      %311 = dma.done [#allocation3], 32
    $region37: #{tpu_custom_call.1} parent=1 // pred_fallthru
      _
    %312 = vsyncpa [#allocation3], 1

</llo_original>
